<compile_context>
chip_gen: v7x
topology: tpu7x:2x2x1
jax: 0.10.0
libtpu: 0.0.40
codegen_flags: <defaults>
</compile_context>

<pallas_src>
import jax
import jax.numpy as jnp
from jax.experimental import pallas as pl
from jax.experimental.pallas import tpu as pltpu


def _round_up(x, m):
    return ((x + m - 1) // m) * m


def _cdiv(a, b):
    return -(-a // b)


def _make_kernel(tk_eff, weight_resident):
    """Kernel closure.

    adj_ref : (TM, TK) int8           fused-weight ref: resident (NK, C_pad)
    bf_ref  : (1, C_pad) f32           or streamed (TK, C_pad), bf16
    outputs : logp_ref, h_ref (TM, C_pad) f32 ; h_ref doubles as accumulator.
    """

    def kernel(adj_ref, wf_ref, bf_ref, logp_ref, h_ref):
        k = pl.program_id(1)

        @pl.when(k == 0)
        def _():
            h_ref[...] = jnp.zeros_like(h_ref)

        # int8 0/1 adjacency -> bf16 on the VPU (cheap filler under DMA/MXU).
        a = adj_ref[...].astype(jnp.float32).astype(jnp.bfloat16)

        if weight_resident:
            start = pl.multiple_of(k * tk_eff, 128)
            w = wf_ref[pl.ds(start, tk_eff), :]
        else:
            w = wf_ref[...]

        h_ref[...] += jnp.dot(a, w, preferred_element_type=jnp.float32)

        @pl.when(k == pl.num_programs(1) - 1)
        def _():
            h = h_ref[...] + bf_ref[...]          # bias add in f32
            h_ref[...] = h
            # log_softmax along the class dim (pad columns carry a -1e30 bias,
            # so they never win the max and contribute exp(...) == 0).
            m = jnp.max(h, axis=1, keepdims=True)
            z = h - m
            lse = jnp.log(jnp.sum(jnp.exp(z), axis=1, keepdims=True))
            logp_ref[...] = (z - lse).astype(logp_ref.dtype)

    return kernel


def model2_forward(edge_index, n_nodes, w11, b11, wout, bout, *,
                   tm=1024, tk=4096):
    """edge_index: (2, E) int32.  n_nodes = N (number of graph nodes).
    w11: (H, N), b11: (H,)   -- torch Linear layout (out, in)
    wout: (C, H), bout: (C,)
    Returns (log_softmax(h, axis=1), h), each (N, C) float32."""
    N = int(n_nodes)
    C = wout.shape[0]

    w11 = jnp.asarray(w11, jnp.float32)
    b11 = jnp.asarray(b11, jnp.float32)
    wout = jnp.asarray(wout, jnp.float32)
    bout = jnp.asarray(bout, jnp.float32)

    # Fuse the two linears exactly: h = adj @ (Wout @ W11)^T + (Wout b11 + bout)
    w_fused = jnp.transpose(wout @ w11)      # (N, C)
    b_fused = wout @ b11 + bout              # (C,)

    # Lane-dense class dim; pad logits get a huge negative bias.
    c_pad = _round_up(max(C, 1), 128)

    # Row tiling: multiples of 32 (int8 sublane packing); keep >= 2 row tiles
    # when the extent allows so the "parallel" axis can use both v7x cores.
    n_rows_base = _round_up(N, 32)
    num_m = max(_cdiv(n_rows_base, tm), 2 if n_rows_base >= 64 else 1)
    tm_eff = _round_up(_cdiv(n_rows_base, num_m), 32)
    n_rows = num_m * tm_eff

    # Contraction tiling: multiples of 128 (lane), equal-split to minimize pad.
    n_k_base = _round_up(N, 128)
    num_k = _cdiv(n_k_base, tk)
    tk_eff = _round_up(_cdiv(n_k_base, num_k), 128)
    n_k = num_k * tk_eff

    # Adjacency built directly at padded shape & narrow dtype (int8 exact for
    # small integer counts; duplicate edges sum like sparse-COO spmm).
    row = jnp.asarray(edge_index[0], jnp.int32)
    col = jnp.asarray(edge_index[1], jnp.int32)
    adj_p = jnp.zeros((n_rows, n_k), jnp.int8)
    adj_p = adj_p.at[row, col].add(jnp.ones_like(row, jnp.int8))

    wf_p = jnp.zeros((n_k, c_pad), jnp.bfloat16)
    wf_p = wf_p.at[:N, :C].set(w_fused.astype(jnp.bfloat16))
    bf_p = jnp.full((1, c_pad), -1e30, jnp.float32)
    bf_p = bf_p.at[0, :C].set(b_fused)

    # Keep the fused weight fully resident in VMEM unless it is huge.
    weight_resident = (n_k * c_pad * 2) <= (16 << 20)
    if weight_resident:
        wf_spec = pl.BlockSpec((n_k, c_pad), lambda i, k: (0, 0))
    else:
        wf_spec = pl.BlockSpec((tk_eff, c_pad), lambda i, k: (k, 0))

    grid = (n_rows // tm_eff, n_k // tk_eff)

    cost = pl.CostEstimate(
        flops=2 * n_rows * n_k * c_pad,
        transcendentals=2 * n_rows * c_pad,                 # exp + log
        bytes_accessed=(adj_p.size * 1                       # int8 adjacency
                        + wf_p.size * 2                      # weight read once
                        + bf_p.size * 4
                        + 2 * n_rows * c_pad * 4),           # two f32 outputs
    )

    kernel = _make_kernel(tk_eff, weight_resident)

    logp, h = pl.pallas_call(
        kernel,
        out_shape=(
            jax.ShapeDtypeStruct((n_rows, c_pad), jnp.float32),
            jax.ShapeDtypeStruct((n_rows, c_pad), jnp.float32),
        ),
        grid_spec=pltpu.PrefetchScalarGridSpec(
            num_scalar_prefetch=0,
            grid=grid,
            in_specs=[
                pl.BlockSpec((tm_eff, tk_eff), lambda i, k: (i, k)),  # adjacency
                wf_spec,                                              # fused weight
                pl.BlockSpec((1, c_pad), lambda i, k: (0, 0)),        # fused bias
            ],
            out_specs=[
                pl.BlockSpec((tm_eff, c_pad), lambda i, k: (i, 0)),
                pl.BlockSpec((tm_eff, c_pad), lambda i, k: (i, 0)),
            ],
        ),
        compiler_params=pltpu.CompilerParams(
            dimension_semantics=("parallel", "arbitrary"),
            vmem_limit_bytes=48 * 1024 * 1024,   # safe on v7x (64 MiB physical)
        ),
        cost_estimate=cost,
    )(adj_p, wf_p, bf_p)

    return logp[:N, :C], h[:N, :C]


def build_dense_adj(edge_index, n):
    # Dense float adjacency for the pure-JAX reference (duplicates sum,
    # matching torch sparse-COO matmul semantics).
    row, col = edge_index[0], edge_index[1]
    adj = jnp.zeros((n, n), jnp.float32)
    adj = adj.at[row, col].add(1.0)
    return adj


if __name__ == "__main__":
    # Small shapes consistent with the module:
    N = 16            # number of graph nodes
    num_features = 8  # dataset.num_features (only fixes unused w22's shape)
    hidden = 32       # args.hidden
    num_classes = 4   # dataset.num_classes

    key = jax.random.PRNGKey(0)
    k_x, k_e, k_w1, k_b1, k_w2, k_b2, k_wo, k_bo = jax.random.split(key, 8)

    # data.x (unused by the forward compute, present for fidelity)
    x = jax.random.normal(k_x, (N, num_features), jnp.float32)

    # Random edge_index (2, E)
    E = 40
    edge_index = jax.random.randint(k_e, (2, E), 0, N, jnp.int32)

    # Deterministic parameter init (torch Linear shapes: weight (out,in), bias (out,))
    w11 = jax.random.normal(k_w1, (hidden, N), jnp.float32) * 0.1
    b11 = jax.random.normal(k_b1, (hidden,), jnp.float32) * 0.1
    # w22 exists in __init__ but is unused in forward; initialize for parity.
    w22 = jax.random.normal(k_w2, (hidden, num_features), jnp.float32) * 0.1
    b22 = jax.random.normal(k_b2, (hidden,), jnp.float32) * 0.1
    wout = jax.random.normal(k_wo, (num_classes, hidden), jnp.float32) * 0.1
    bout = jax.random.normal(k_bo, (num_classes,), jnp.float32) * 0.1

    logp, h = model2_forward(edge_index, N, w11, b11, wout, bout)
    jax.block_until_ready((logp, h))
    assert logp.shape == (N, num_classes) and h.shape == (N, num_classes)

    adj = build_dense_adj(edge_index, N)

    # 1) Reference matching the kernel's numerics (bf16 operands, f32 acc).
    w_fused = jnp.transpose(wout @ w11)
    b_fused = wout @ b11 + bout
    h_match = jnp.dot(adj.astype(jnp.bfloat16), w_fused.astype(jnp.bfloat16),
                      preferred_element_type=jnp.float32) + b_fused
    logp_match = jax.nn.log_softmax(h_match, axis=1)
    assert jnp.allclose(h, h_match, atol=1e-3, rtol=1e-3)
    assert jnp.allclose(logp, logp_match, atol=1e-3, rtol=1e-3)

    # 2) Full-f32 torch-semantics reference (two separate Linears).
    h_f32 = (adj @ w11.T + b11) @ wout.T + bout
    logp_f32 = jax.nn.log_softmax(h_f32, axis=1)
    assert jnp.allclose(h, h_f32, atol=5e-2, rtol=5e-2)
    assert jnp.allclose(logp, logp_f32, atol=5e-2, rtol=5e-2)

    print("KERNEL_OK")
</pallas_src>

<mosaic_0001>
module attributes {stable_mosaic.version = 11 : i64} {
  func.func @kernel(%arg0: i32, %arg1: i32, %arg2: memref<32x128xi8, #tpu.memory_space<vmem>>, %arg3: memref<128x128xbf16, #tpu.memory_space<vmem>>, %arg4: memref<1x128xf32, #tpu.memory_space<vmem>>, %arg5: memref<32x128xf32, #tpu.memory_space<vmem>>, %arg6: memref<32x128xf32, #tpu.memory_space<vmem>>) attributes {dimension_semantics = [#tpu.dimension_semantics<parallel>, #tpu.dimension_semantics<arbitrary>], iteration_bounds = array<i64: 1, 1>, scalar_prefetch = 0 : i64, scratch_operands = 0 : i64, tpu.core_type = #tpu.core_type<tc>, window_params = [{transform_indices = @transform_0, window_bounds = array<i64: 32, 128>}, {pipeline_mode = #tpu.pipeline_mode<synchronous>, transform_indices = @transform_1, window_bounds = array<i64: 128, 128>}, {pipeline_mode = #tpu.pipeline_mode<synchronous>, transform_indices = @transform_2, window_bounds = array<i64: 1, 128>}, {transform_indices = @transform_3, window_bounds = array<i64: 32, 128>}, {transform_indices = @transform_4, window_bounds = array<i64: 32, 128>}]} {
    %c0_i32 = arith.constant 0 : i32
    %0 = arith.cmpi eq, %arg1, %c0_i32 : i32
    %1 = arith.extui %0 : i1 to i32
    %c0_i32_0 = arith.constant 0 : i32
    %2 = arith.cmpi ne, %1, %c0_i32_0 : i32
    scf.if %2 {
      %cst_9 = arith.constant 0.000000e+00 : f32
      %17 = vector.broadcast %cst_9 : f32 to vector<32x128xf32>
      %c0_10 = arith.constant 0 : index
      %c0_11 = arith.constant 0 : index
      %18 = vector.load %arg6[%c0_10, %c0_11] : memref<32x128xf32, #tpu.memory_space<vmem>>, vector<32x128xf32>
      tpu.vector_store %arg6[%c0_10, %c0_11], %17 {strides = array<i32>} : memref<32x128xf32, #tpu.memory_space<vmem>>, vector<32x128xf32>,
    } else {
    }
    %c0 = arith.constant 0 : index
    %c0_1 = arith.constant 0 : index
    %3 = vector.load %arg2[%c0, %c0_1] : memref<32x128xi8, #tpu.memory_space<vmem>>, vector<32x128xi8>
    %4 = arith.sitofp %3 : vector<32x128xi8> to vector<32x128xf32>
    %5 = arith.truncf %4 : vector<32x128xf32> to vector<32x128xbf16>
    %c128_i32 = arith.constant 128 : i32
    %6 = arith.muli %arg1, %c128_i32 : i32
    %7 = tpu.assume_multiple %6, 128 : i32
    %8 = arith.index_cast %7 : i32 to index
    %c0_2 = arith.constant 0 : index
    %9 = vector.load %arg3[%8, %c0_2] : memref<128x128xbf16, #tpu.memory_space<vmem>>, vector<128x128xbf16>
    %c0_3 = arith.constant 0 : index
    %c0_4 = arith.constant 0 : index
    %10 = vector.load %arg6[%c0_3, %c0_4] : memref<32x128xf32, #tpu.memory_space<vmem>>, vector<32x128xf32>
    %cst = arith.constant dense<0.000000e+00> : vector<32x128xf32>
    %11 = tpu.matmul %5, %9, %cst {dimension_numbers = #tpu.dot_dimension_numbers<[1], [0], [0], [1], [0, 0, 1, 1], [], []>} : vector<32x128xbf16>, vector<128x128xbf16>, vector<32x128xf32> -> vector<32x128xf32>
    %12 = arith.addf %10, %11 : vector<32x128xf32>
    %c0_5 = arith.constant 0 : index
    %c0_6 = arith.constant 0 : index
    %13 = vector.load %arg6[%c0_5, %c0_6] : memref<32x128xf32, #tpu.memory_space<vmem>>, vector<32x128xf32>
    tpu.vector_store %arg6[%c0_5, %c0_6], %12 {strides = array<i32>} : memref<32x128xf32, #tpu.memory_space<vmem>>, vector<32x128xf32>,
    %c0_i32_7 = arith.constant 0 : i32
    %14 = arith.cmpi eq, %arg1, %c0_i32_7 : i32
    %15 = arith.extui %14 : i1 to i32
    %c0_i32_8 = arith.constant 0 : i32
    %16 = arith.cmpi ne, %15, %c0_i32_8 : i32
    scf.if %16 {
      %c0_9 = arith.constant 0 : index
      %c0_10 = arith.constant 0 : index
      %17 = vector.load %arg6[%c0_9, %c0_10] : memref<32x128xf32, #tpu.memory_space<vmem>>, vector<32x128xf32>
      %c0_11 = arith.constant 0 : index
      %c0_12 = arith.constant 0 : index
      %18 = vector.load %arg4[%c0_11, %c0_12] : memref<1x128xf32, #tpu.memory_space<vmem>>, vector<1x128xf32>
      %19 = vector.broadcast %18 : vector<1x128xf32> to vector<32x128xf32>
      %20 = arith.addf %17, %19 : vector<32x128xf32>
      %c0_13 = arith.constant 0 : index
      %c0_14 = arith.constant 0 : index
      %21 = vector.load %arg6[%c0_13, %c0_14] : memref<32x128xf32, #tpu.memory_space<vmem>>, vector<32x128xf32>
      tpu.vector_store %arg6[%c0_13, %c0_14], %20 {strides = array<i32>} : memref<32x128xf32, #tpu.memory_space<vmem>>, vector<32x128xf32>,
      %cst_15 = arith.constant dense<0xFF800000> : vector<32xf32>
      %22 = vector.multi_reduction <maximumf>, %20, %cst_15 [1] : vector<32x128xf32> to vector<32xf32>
      %23 = vector.shape_cast %22 : vector<32xf32> to vector<32x1xf32>
      %24 = vector.broadcast %23 : vector<32x1xf32> to vector<32x128xf32>
      %25 = arith.subf %20, %24 : vector<32x128xf32>
      %26 = math.exp %25 : vector<32x128xf32>
      %cst_16 = arith.constant dense<0.000000e+00> : vector<32xf32>
      %27 = vector.multi_reduction <add>, %26, %cst_16 [1] : vector<32x128xf32> to vector<32xf32>
      %28 = vector.shape_cast %27 : vector<32xf32> to vector<32x1xf32>
      %29 = math.log %28 : vector<32x1xf32>
      %30 = vector.broadcast %29 : vector<32x1xf32> to vector<32x128xf32>
      %31 = arith.subf %25, %30 : vector<32x128xf32>
      %c0_17 = arith.constant 0 : index
      %c0_18 = arith.constant 0 : index
      %32 = vector.load %arg5[%c0_17, %c0_18] : memref<32x128xf32, #tpu.memory_space<vmem>>, vector<32x128xf32>
      tpu.vector_store %arg5[%c0_17, %c0_18], %31 {strides = array<i32>} : memref<32x128xf32, #tpu.memory_space<vmem>>, vector<32x128xf32>,
    } else {
    }
    return
  }
  func.func @transform_0(%arg0: i32, %arg1: i32) -> (i32, i32) {
    %c0_i32 = arith.constant 0 : i32
    return %arg0, %arg1 : i32, i32
  }
  func.func @transform_1(%arg0: i32, %arg1: i32) -> (i32, i32) {
    %c0_i32 = arith.constant 0 : i32
    %c0_i32_0 = arith.constant 0 : i32
    %c0_i32_1 = arith.constant 0 : i32
    return %c0_i32, %c0_i32_0 : i32, i32
  }
  func.func @transform_2(%arg0: i32, %arg1: i32) -> (i32, i32) {
    %c0_i32 = arith.constant 0 : i32
    %c0_i32_0 = arith.constant 0 : i32
    %c0_i32_1 = arith.constant 0 : i32
    return %c0_i32, %c0_i32_0 : i32, i32
  }
  func.func @transform_3(%arg0: i32, %arg1: i32) -> (i32, i32) {
    %c0_i32 = arith.constant 0 : i32
    %c0_i32_0 = arith.constant 0 : i32
    return %arg0, %c0_i32 : i32, i32
  }
  func.func @transform_4(%arg0: i32, %arg1: i32) -> (i32, i32) {
    %c0_i32 = arith.constant 0 : i32
    %c0_i32_0 = arith.constant 0 : i32
    return %arg0, %c0_i32 : i32, i32
  }
}

</mosaic_0001>

<llo_original>
// kernel: tpu_custom_call.1
$region0: #{tpu_custom_call.1}
  #allocation0 [shape = 'u32[]', space=smem, size = 0x4, offset = 0x4, fixed_abs, tag = 'smem constant byte address 0x4 - core index']
  #allocation1 [shape = 'u32[144,128]{1,0:T(1,128)}', space=vmem, size = 0x12000, scoped, tag = 'internal scratch']
  %s0 = inlined_call_operand.hbm [shape: s8[32,128], index: 0, kind: input, shape index: {}]
  %s1 = inlined_call_operand.hbm [shape: bf16[128,128], index: 1, kind: input, shape index: {}]
  %s2 = inlined_call_operand.vmem [shape: f32[1,128], index: 2, kind: input, shape index: {}]
  %s3 = inlined_call_operand.hbm [shape: f32[32,128], index: 3, kind: output, shape index: {0}]
  %s4 = inlined_call_operand.hbm [shape: f32[32,128], index: 4, kind: output, shape index: {1}]
  %5 = xla_tuple %s3, %s4
  %s6 = sld [smem:[#allocation0]]
  $region46: #{tpu_custom_call.1} parent=0
    _
  %s8 = ssub.s32 1, %s6
  %s9 = scalar_select 0, %s8, %s6
  $region1: #{tpu_custom_call.1} parent=0
    #allocation2 [shape = 'u8[4096]{0}', space=vmem, size = 0x1000, scoped, tag = 'input window, operand 0, single buffered']
    #allocation3 [shape = 's32[1]{0}', space=sflag, size = 0x4, scoped, tag = 'scoped memory for tpu_custom_call.1']
    #allocation4 [shape = 's32[1]{0}', space=sflag, size = 0x4, scoped, tag = 'scoped memory for tpu_custom_call.1']
    #allocation5 [shape = 'u8[32768]{0}', space=vmem, size = 0x8000, scoped, tag = 'input window, operand 1, single buffered']
    #allocation6 [shape = 's32[1]{0}', space=sflag, size = 0x4, scoped, tag = 'scoped memory for tpu_custom_call.1']
    #allocation7 [shape = 'u8[16384]{0}', space=vmem, size = 0x4000, scoped, tag = 'output window, operand 0, single buffered']
    #allocation8 [shape = 'u8[16384]{0}', space=vmem, size = 0x4000, scoped, tag = 'output window, operand 1, single buffered']
    #allocation9 [shape = 's32[1]{0}', space=sflag, size = 0x4, scoped, tag = 'scoped memory for tpu_custom_call.1']
    %10 = vsyncpa [#allocation3], 0
    %11 = vsyncpa [#allocation6], 0
    %12 = vsyncpa [#allocation4], 0
    %13 = vsyncpa [#allocation9], 0
    // Predicated region
    $region2: #{tpu_custom_call.1} parent=1 // pred_check
      _
    $region3: #{tpu_custom_call.1} parent=1 // pred_check_branch
      %15 = sbr.rel (0) target = $region5
    $region4: #{tpu_custom_call.1} parent=1 // pred_region
      %s17 = ssub.s32 128, 128
      %18 = vsyncadd [#allocation3], %s17
      %s20 = sshll.u32 [#allocation2], 4
      %s21 = int_to_ptr.vmem [resolvable:$true] %s20
      %23 = dma.hbm_to_vmem [thread:$0]  %s0, 128, %s21, [#allocation3]
    $region5: #{tpu_custom_call.1} parent=1 // pred_fallthru
      _
    // Predicated region
    $region6: #{tpu_custom_call.1} parent=1 // pred_check
      _
    $region7: #{tpu_custom_call.1} parent=1 // pred_check_branch
      %25 = sbr.rel (0) target = $region9
    $region8: #{tpu_custom_call.1} parent=1 // pred_region
      %s27 = ssub.s32 1024, 1024
      %28 = vsyncadd [#allocation6], %s27
      %s29 = sshll.u32 [#allocation5], 4
      %s30 = int_to_ptr.vmem [resolvable:$true] %s29
      %35 = dma.hbm_to_vmem [thread:$0]  %s1, 1024, %s30, [#allocation6], 64, 64, 4
    $region9: #{tpu_custom_call.1} parent=1 // pred_fallthru
      _
    // Predicated region
    $region10: #{tpu_custom_call.1} parent=1 // pred_check
      _
    $region11: #{tpu_custom_call.1} parent=1 // pred_check_branch
      %37 = sbr.rel (0) target = $region13
    $region12: #{tpu_custom_call.1} parent=1 // pred_region
      _
    $region13: #{tpu_custom_call.1} parent=1 // pred_fallthru
      _
    // Predicated region
    $region14: #{tpu_custom_call.1} parent=1 // pred_check
      _
    $region15: #{tpu_custom_call.1} parent=1 // pred_check_branch
      %39 = sbr.rel (0) target = $region17
    $region16: #{tpu_custom_call.1} parent=1 // pred_region
      %40 = dma.done [#allocation3], 128
    $region17: #{tpu_custom_call.1} parent=1 // pred_fallthru
      _
    // Predicated region
    $region18: #{tpu_custom_call.1} parent=1 // pred_check
      _
    $region19: #{tpu_custom_call.1} parent=1 // pred_check_branch
      %42 = sbr.rel (0) target = $region21
    $region20: #{tpu_custom_call.1} parent=1 // pred_region
      %43 = dma.done [#allocation6], 1024
    $region21: #{tpu_custom_call.1} parent=1 // pred_fallthru
      _
    %p45 = scmp.eq.s32.totalorder 0, 0
    // Predicated region
    $region22: #{tpu_custom_call.1} parent=1 // pred_check
      %p46 = pneg %p45
    $region23: #{tpu_custom_call.1} parent=1 // pred_check_branch
      %48 = sbr.rel (%p46) target = $region25
    $region24: #{tpu_custom_call.1} parent=1 // pred_region
      %49 = vst [vmem:[#allocation8] sm:$0xff] 0.0
      %50 = vst [vmem:[#allocation8 + $0x8] sm:$0xff] 0.0
      %51 = vst [vmem:[#allocation8 + $0x10] sm:$0xff] 0.0
      %52 = vst [vmem:[#allocation8 + $0x18] sm:$0xff] 0.0
    $region25: #{tpu_custom_call.1} parent=1 // pred_fallthru
      _
    %v53 = vld [vmem:[#allocation2] sm:$0xff]
    %v54 = vunpack.c.l.s8.bf16 %v53
    %v55 = vunpack.c.h.s8.bf16 %v53
    %s56 = smul.u32 0, 128
    %s57 = sshra.s32 %s56, 3
    %s58 = sand.u32 %s56, 7
    %s59 = smul.addr %s57, 4
    %s60 = scalar_lea.vmem [#allocation5], %s59
    %v61 = vld [vmem:[%s60] sm:$0xf]
    %v62 = vld [vmem:[%s60 + $0x4] sm:$0xf]
    %v63 = vld [vmem:[%s60 + $0x8] sm:$0xf]
    %v64 = vld [vmem:[%s60 + $0xc] sm:$0xf]
    %v65 = vld [vmem:[%s60 + $0x10] sm:$0xf]
    %v66 = vld [vmem:[%s60 + $0x14] sm:$0xf]
    %v67 = vld [vmem:[%s60 + $0x18] sm:$0xf]
    %v68 = vld [vmem:[%s60 + $0x1c] sm:$0xf]
    %v69 = vld [vmem:[%s60 + $0x20] sm:$0xf]
    %v70 = vld [vmem:[%s60 + $0x24] sm:$0xf]
    %v71 = vld [vmem:[%s60 + $0x28] sm:$0xf]
    %v72 = vld [vmem:[%s60 + $0x2c] sm:$0xf]
    %v73 = vld [vmem:[%s60 + $0x30] sm:$0xf]
    %v74 = vld [vmem:[%s60 + $0x34] sm:$0xf]
    %v75 = vld [vmem:[%s60 + $0x38] sm:$0xf]
    %v76 = vld [vmem:[%s60 + $0x3c] sm:$0xf]
    %v77 = vld [vmem:[#allocation8] sm:$0xff]
    %v78 = vld [vmem:[#allocation8 + $0x8] sm:$0xff]
    %v79 = vld [vmem:[#allocation8 + $0x10] sm:$0xff]
    %v80 = vld [vmem:[#allocation8 + $0x18] sm:$0xff]
    %v97 = vunpack.c.l.b16 %v61
    %v98 = vunpack.c.l.b16 %v62
    %v99 = vunpack.c.l.b16 %v63
    %v100 = vunpack.c.l.b16 %v64
    %v101 = vunpack.c.l.b16 %v65
    %v102 = vunpack.c.l.b16 %v66
    %v103 = vunpack.c.l.b16 %v67
    %v104 = vunpack.c.l.b16 %v68
    %v105 = vunpack.c.l.b16 %v69
    %v106 = vunpack.c.l.b16 %v70
    %v107 = vunpack.c.l.b16 %v71
    %v108 = vunpack.c.l.b16 %v72
    %v109 = vunpack.c.l.b16 %v73
    %v110 = vunpack.c.l.b16 %v74
    %v111 = vunpack.c.l.b16 %v75
    %v112 = vunpack.c.l.b16 %v76
    %v113 = vpack.c.b16 %v98, %v97
    %v114 = vpack.c.b16 %v100, %v99
    %v115 = vpack.c.b16 %v102, %v101
    %v116 = vpack.c.b16 %v104, %v103
    %v117 = vpack.c.b16 %v106, %v105
    %v118 = vpack.c.b16 %v108, %v107
    %v119 = vpack.c.b16 %v110, %v109
    %v120 = vpack.c.b16 %v112, %v111
    %129 = vmatprep.subr.bf16.mxu0 0
    %130 = vmatpush1.bf16.msra.mxu0 %v113
    %131 = vmatprep.subr.bf16.mxu0 0
    %132 = vmatpush1.bf16.msra.mxu0 %v114
    %133 = vmatprep.subr.bf16.mxu0 0
    %134 = vmatpush1.bf16.msra.mxu0 %v115
    %135 = vmatprep.subr.bf16.mxu0 0
    %136 = vmatpush1.bf16.msra.mxu0 %v116
    %137 = vmatprep.subr.bf16.mxu0 0
    %138 = vmatpush1.bf16.msra.mxu0 %v117
    %139 = vmatprep.subr.bf16.mxu0 0
    %140 = vmatpush1.bf16.msra.mxu0 %v118
    %141 = vmatprep.subr.bf16.mxu0 0
    %142 = vmatpush1.bf16.msra.mxu0 %v119
    %143 = vmatprep.subr.bf16.mxu0 0
    %144 = vmatpush1.bf16.msra.mxu0 %v120
    %145 = vmatprep.subr.bf16.mxu0 0
    %146 = vmatpush1.bf16.msra.mxu0 0
    %147 = vmatprep.subr.bf16.mxu0 0
    %148 = vmatpush1.bf16.msra.mxu0 0
    %149 = vmatprep.subr.bf16.mxu0 0
    %150 = vmatpush1.bf16.msra.mxu0 0
    %151 = vmatprep.subr.bf16.mxu0 0
    %152 = vmatpush1.bf16.msra.mxu0 0
    %153 = vmatprep.subr.bf16.mxu0 0
    %154 = vmatpush1.bf16.msra.mxu0 0
    %155 = vmatprep.subr.bf16.mxu0 0
    %156 = vmatpush1.bf16.msra.mxu0 0
    %157 = vmatprep.subr.bf16.mxu0 0
    %158 = vmatpush1.bf16.msra.mxu0 0
    %159 = vmatprep.subr.bf16.mxu0 0
    %160 = vmatpush1.bf16.msra.mxu0 0
    %161 = vmatprep.mubr.bf16.mxu0 0
    %162 = vmatmul.mubr.bf16.gmra.mrb[0].mxu0 %v54
    %v163 = vpop.f32.mrb[0].mxu0
    %v164 = vadd.f32 0.0, %v163
    %v165 = vpop.f32.mrb[0].mxu0
    %v166 = vpop.f32.mrb[0].mxu0
    %v167 = vadd.f32 0.0, %v166
    %v168 = vpop.f32.mrb[0].mxu0
    %169 = vmatprep.mubr.bf16.mxu0 0
    %170 = vmatmul.mubr.bf16.gmra.mrb[0].mxu0 %v55
    %v171 = vpop.f32.mrb[0].mxu0
    %v172 = vadd.f32 0.0, %v171
    %v173 = vpop.f32.mrb[0].mxu0
    %v174 = vpop.f32.mrb[0].mxu0
    %v175 = vadd.f32 0.0, %v174
    %v176 = vpop.f32.mrb[0].mxu0
    %177 = vdwg.mxu0
    %v178 = vadd.f32 %v77, %v164
    %v179 = vadd.f32 %v78, %v167
    %v180 = vadd.f32 %v79, %v172
    %v181 = vadd.f32 %v80, %v175
    %182 = vst [vmem:[#allocation8] sm:$0xff] %v178
    %183 = vst [vmem:[#allocation8 + $0x8] sm:$0xff] %v179
    %184 = vst [vmem:[#allocation8 + $0x10] sm:$0xff] %v180
    %185 = vst [vmem:[#allocation8 + $0x18] sm:$0xff] %v181
    // Predicated region
    $region26: #{tpu_custom_call.1} parent=1 // pred_check
      %p186 = pneg %p45
    $region27: #{tpu_custom_call.1} parent=1 // pred_check_branch
      %188 = sbr.rel (%p186) target = $region29
    $region28: #{tpu_custom_call.1} parent=1 // pred_region
      %v189 = vld [vmem:[#allocation8] sm:$0xff]
      %v190 = vld [vmem:[#allocation8 + $0x8] sm:$0xff]
      %v191 = vld [vmem:[#allocation8 + $0x10] sm:$0xff]
      %v192 = vld [vmem:[#allocation8 + $0x18] sm:$0xff]
      %v193 = vld [vmem:[%s2] sm:$0x1]
      %v195 = vlaneseq
      %v196 = vshrl.u32 %v195, 7
      %v197 = vsub.s32 0, %v196
      %v198 = vrot.slane %v193, %v197
      %v200 = vadd.f32 %v189, %v198
      %v201 = vadd.f32 %v190, %v198
      %v202 = vadd.f32 %v191, %v198
      %v203 = vadd.f32 %v192, %v198
      %204 = vst [vmem:[#allocation8] sm:$0xff] %v200
      %205 = vst [vmem:[#allocation8 + $0x8] sm:$0xff] %v201
      %206 = vst [vmem:[#allocation8 + $0x10] sm:$0xff] %v202
      %207 = vst [vmem:[#allocation8 + $0x18] sm:$0xff] %v203
      %208 = vmax.xlane.f32.xlu0 %v200
      %v209 = vpop.xlane.xlu0 %208
      %210 = vmax.xlane.f32.xlu0 %v201
      %v211 = vpop.xlane.xlu0 %210
      %212 = vmax.xlane.f32.xlu0 %v202
      %v213 = vpop.xlane.xlu0 %212
      %214 = vmax.xlane.f32.xlu0 %v203
      %v215 = vpop.xlane.xlu0 %214
      %v216 = vsub.f32 %v200, %v209
      %v217 = vsub.f32 %v201, %v211
      %v218 = vsub.f32 %v202, %v213
      %v219 = vsub.f32 %v203, %v215
      %v220 = vmul.f32 %v216, 1.442695
      %v221 = vpow.pop %v220
      %v222 = vmul.f32 %v217, 1.442695
      %v223 = vpow.pop %v222
      %v224 = vmul.f32 %v218, 1.442695
      %v225 = vpow.pop %v224
      %v226 = vmul.f32 %v219, 1.442695
      %v227 = vpow.pop %v226
      %228 = vadd.xlane.f32.xlu0 %v221
      %v229 = vpop.xlane.xlu0 %228
      %230 = vadd.xlane.f32.xlu0 %v223
      %v231 = vpop.xlane.xlu0 %230
      %232 = vadd.xlane.f32.xlu0 %v225
      %v233 = vpop.xlane.xlu0 %232
      %234 = vadd.xlane.f32.xlu0 %v227
      %v235 = vpop.xlane.xlu0 %234
      %v236 = vlog2.pop %v229
      %v237 = vmul.f32 %v236, 0.6931472
      %v238 = vlog2.pop %v231
      %v239 = vmul.f32 %v238, 0.6931472
      %v240 = vlog2.pop %v233
      %v241 = vmul.f32 %v240, 0.6931472
      %v242 = vlog2.pop %v235
      %v243 = vmul.f32 %v242, 0.6931472
      %v244 = vsub.f32 %v216, %v237
      %v245 = vsub.f32 %v217, %v239
      %v246 = vsub.f32 %v218, %v241
      %v247 = vsub.f32 %v219, %v243
      %248 = vst [vmem:[#allocation7] sm:$0xff] %v244
      %249 = vst [vmem:[#allocation7 + $0x8] sm:$0xff] %v245
      %250 = vst [vmem:[#allocation7 + $0x10] sm:$0xff] %v246
      %251 = vst [vmem:[#allocation7 + $0x18] sm:$0xff] %v247
    $region29: #{tpu_custom_call.1} parent=1 // pred_fallthru
      _
    // Predicated region
    $region30: #{tpu_custom_call.1} parent=1 // pred_check
      _
    $region31: #{tpu_custom_call.1} parent=1 // pred_check_branch
      %253 = sbr.rel (0) target = $region33
    $region32: #{tpu_custom_call.1} parent=1 // pred_region
      %s255 = ssub.s32 512, 512
      %256 = vsyncadd [#allocation4], %s255
      %s257 = sshll.u32 [#allocation7], 4
      %s258 = int_to_ptr.vmem [resolvable:$true] %s257
      %263 = dma.vmem_to_hbm [thread:$0]  %s258, 512, %s3, [#allocation4], 128, 128, 8
    $region33: #{tpu_custom_call.1} parent=1 // pred_fallthru
      _
    // Predicated region
    $region34: #{tpu_custom_call.1} parent=1 // pred_check
      _
    $region35: #{tpu_custom_call.1} parent=1 // pred_check_branch
      %265 = sbr.rel (0) target = $region37
    $region36: #{tpu_custom_call.1} parent=1 // pred_region
      %s267 = ssub.s32 512, 512
      %268 = vsyncadd [#allocation9], %s267
      %s269 = sshll.u32 [#allocation8], 4
      %s270 = int_to_ptr.vmem [resolvable:$true] %s269
      %275 = dma.vmem_to_hbm [thread:$0]  %s270, 512, %s4, [#allocation9], 128, 128, 8
    $region37: #{tpu_custom_call.1} parent=1 // pred_fallthru
      _
    // Predicated region
    $region38: #{tpu_custom_call.1} parent=1 // pred_check
      _
    $region39: #{tpu_custom_call.1} parent=1 // pred_check_branch
      %277 = sbr.rel (0) target = $region41
    $region40: #{tpu_custom_call.1} parent=1 // pred_region
      %278 = dma.done [#allocation4], 512
    $region41: #{tpu_custom_call.1} parent=1 // pred_fallthru
      _
    // Predicated region
    $region42: #{tpu_custom_call.1} parent=1 // pred_check
      _
    $region43: #{tpu_custom_call.1} parent=1 // pred_check_branch
      %280 = sbr.rel (0) target = $region45
    $region44: #{tpu_custom_call.1} parent=1 // pred_region
      %281 = dma.done [#allocation9], 512
    $region45: #{tpu_custom_call.1} parent=1 // pred_fallthru
      _
    %282 = vsyncpa [#allocation3], 1
    %283 = vsyncpa [#allocation6], 1
    %284 = vsyncpa [#allocation4], 1
    %285 = vsyncpa [#allocation9], 1

</llo_original>
